<compile_context>
chip_gen: v5e
topology: v5e:2x2
jax: 0.10.0
libtpu: 0.0.40
codegen_flags: <defaults>
</compile_context>

<pallas_src>
import functools

import jax
import jax.numpy as jnp
from jax import lax
from jax.experimental import pallas as pl
from jax.experimental.pallas import tpu as pltpu


def rbm_kernel(v_ref, w_ref, b_ref, c_ref, uh_ref, uv_ref, out_ref, *, k):
    # Weights cast once per batch tile; block index is constant so W stays VMEM-resident.
    W16 = w_ref[...].astype(jnp.bfloat16)     # (V, H)
    b = b_ref[...]                            # (1, V)  f32
    c = c_ref[...]                            # (1, H)  f32

    def gibbs_step(step, v):
        # p(h | v) = sigmoid(v @ W + c)
        p_h = jax.nn.sigmoid(
            jnp.dot(v.astype(jnp.bfloat16), W16,
                    preferred_element_type=jnp.float32) + c)
        h = (uh_ref[step] < p_h).astype(jnp.float32)          # (TB, H) in {0,1}

        # p(v | h) = sigmoid(h @ W.T + b), done as a transposed-RHS contraction
        # (contract hidden axis of h with hidden axis of W) -> no separate W.T copy.
        p_v = jax.nn.sigmoid(
            lax.dot_general(h.astype(jnp.bfloat16), W16,
                            dimension_numbers=(((1,), (1,)), ((), ())),
                            preferred_element_type=jnp.float32) + b)
        v_new = (uv_ref[step] < p_v).astype(jnp.float32)       # (TB, V) in {0,1}
        return v_new

    v0 = v_ref[...]
    out_ref[...] = lax.fori_loop(0, k, gibbs_step, v0, unroll=(k <= 4))


def _pick_batch_tile(B):
    for tb in (256, 128, 64, 32, 16, 8):
        if B % tb == 0:
            return tb
    return B


def rbm_forward(v, W, b, c, key, *, k=2):
    """Equivalent of RBM.forward: k Gibbs steps starting from visible state v."""
    B, V = v.shape
    H = W.shape[1]

    # Pre-drawn uniforms for the Bernoulli samples (k hidden draws, k visible draws).
    kh, kv = jax.random.split(key)
    u_h = jax.random.uniform(kh, (k, B, H), dtype=jnp.float32)
    u_v = jax.random.uniform(kv, (k, B, V), dtype=jnp.float32)

    TB = _pick_batch_tile(B)
    grid = (pl.cdiv(B, TB),)

    kernel = functools.partial(rbm_kernel, k=k)

    return pl.pallas_call(
        kernel,
        out_shape=jax.ShapeDtypeStruct((B, V), jnp.float32),
        grid_spec=pltpu.PrefetchScalarGridSpec(
            num_scalar_prefetch=0,
            grid=grid,
            in_specs=[
                pl.BlockSpec((TB, V), lambda i: (i, 0)),      # v tile
                pl.BlockSpec((V, H), lambda i: (0, 0)),       # W (resident)
                pl.BlockSpec((1, V), lambda i: (0, 0)),       # b
                pl.BlockSpec((1, H), lambda i: (0, 0)),       # c
                pl.BlockSpec((k, TB, H), lambda i: (0, i, 0)),  # hidden-noise tile
                pl.BlockSpec((k, TB, V), lambda i: (0, i, 0)),  # visible-noise tile
            ],
            out_specs=pl.BlockSpec((TB, V), lambda i: (i, 0)),
        ),
        compiler_params=pltpu.CompilerParams(
            # Batch tiles are independent -> shard across TensorCores on v7x.
            dimension_semantics=("parallel",)),
    )(v, W, b.reshape(1, V), c.reshape(1, H), u_h, u_v)


if __name__ == "__main__":
    # Small shapes consistent with the module: visible_units=128, hidden_units=128,
    # batch=8, k=2 Gibbs steps.
    B, V, H, K = 8, 128, 128, 2

    key = jax.random.PRNGKey(0)
    k_w, k_v, k_noise = jax.random.split(key, 3)

    # Deterministic parameter init mirroring RBM.__init__:
    #   W ~ 0.01 * randn(V, H), b = zeros(V), c = zeros(H)
    W = (0.01 * jax.random.normal(k_w, (V, H))).astype(jnp.float32)
    b = jnp.zeros((V,), dtype=jnp.float32)
    c = jnp.zeros((H,), dtype=jnp.float32)

    # Binary visible input (typical RBM usage).
    v0 = (jax.random.uniform(k_v, (B, V)) < 0.5).astype(jnp.float32)

    out = rbm_forward(v0, W, b, c, k_noise, k=K)
    out = jax.block_until_ready(out)

    assert out.shape == (B, V)
    assert out.dtype == jnp.float32
    # Sampled visible units must be binary {0, 1}.
    assert bool(jnp.all((out == 0.0) | (out == 1.0)))

    print("KERNEL_OK")
</pallas_src>

<mosaic_0001>
module attributes {stable_mosaic.version = 11 : i64} {
  func.func @rbm_kernel(%arg0: i32, %arg1: memref<8x128xf32, #tpu.memory_space<vmem>>, %arg2: memref<128x128xf32, #tpu.memory_space<vmem>>, %arg3: memref<1x128xf32, #tpu.memory_space<vmem>>, %arg4: memref<1x128xf32, #tpu.memory_space<vmem>>, %arg5: memref<2x8x128xf32, #tpu.memory_space<vmem>>, %arg6: memref<2x8x128xf32, #tpu.memory_space<vmem>>, %arg7: memref<8x128xf32, #tpu.memory_space<vmem>>) attributes {dimension_semantics = [#tpu.dimension_semantics<parallel>], iteration_bounds = array<i64: 1>, scalar_prefetch = 0 : i64, scratch_operands = 0 : i64, tpu.core_type = #tpu.core_type<tc>, window_params = [{transform_indices = @transform_0, window_bounds = array<i64: 8, 128>}, {pipeline_mode = #tpu.pipeline_mode<synchronous>, transform_indices = @transform_1, window_bounds = array<i64: 128, 128>}, {pipeline_mode = #tpu.pipeline_mode<synchronous>, transform_indices = @transform_2, window_bounds = array<i64: 1, 128>}, {pipeline_mode = #tpu.pipeline_mode<synchronous>, transform_indices = @transform_3, window_bounds = array<i64: 1, 128>}, {transform_indices = @transform_4, window_bounds = array<i64: 2, 8, 128>}, {transform_indices = @transform_5, window_bounds = array<i64: 2, 8, 128>}, {transform_indices = @transform_6, window_bounds = array<i64: 8, 128>}]} {
    %c0 = arith.constant 0 : index
    %c0_0 = arith.constant 0 : index
    %0 = vector.load %arg2[%c0, %c0_0] : memref<128x128xf32, #tpu.memory_space<vmem>>, vector<128x128xf32>
    %1 = arith.truncf %0 : vector<128x128xf32> to vector<128x128xbf16>
    %c0_1 = arith.constant 0 : index
    %c0_2 = arith.constant 0 : index
    %2 = vector.load %arg3[%c0_1, %c0_2] : memref<1x128xf32, #tpu.memory_space<vmem>>, vector<1x128xf32>
    %c0_3 = arith.constant 0 : index
    %c0_4 = arith.constant 0 : index
    %3 = vector.load %arg4[%c0_3, %c0_4] : memref<1x128xf32, #tpu.memory_space<vmem>>, vector<1x128xf32>
    %c0_5 = arith.constant 0 : index
    %c0_6 = arith.constant 0 : index
    %4 = vector.load %arg1[%c0_5, %c0_6] : memref<8x128xf32, #tpu.memory_space<vmem>>, vector<8x128xf32>
    %c0_i32 = arith.constant 0 : i32
    %5 = arith.truncf %4 : vector<8x128xf32> to vector<8x128xbf16>
    %cst = arith.constant dense<0.000000e+00> : vector<8x128xf32>
    %6 = tpu.matmul %5, %1, %cst {dimension_numbers = #tpu.dot_dimension_numbers<[1], [0], [0], [1], [0, 0, 1, 1], [], []>} : vector<8x128xbf16>, vector<128x128xbf16>, vector<8x128xf32> -> vector<8x128xf32>
    %7 = vector.broadcast %3 : vector<1x128xf32> to vector<8x128xf32>
    %8 = arith.addf %6, %7 : vector<8x128xf32>
    %9 = arith.negf %8 : vector<8x128xf32>
    %10 = math.exp %9 : vector<8x128xf32>
    %cst_7 = arith.constant 1.000000e+00 : f32
    %11 = vector.broadcast %cst_7 : f32 to vector<8x128xf32>
    %12 = arith.addf %11, %10 : vector<8x128xf32>
    %13 = arith.divf %11, %12 : vector<8x128xf32>
    %14 = arith.index_cast %c0_i32 : i32 to index
    %c0_8 = arith.constant 0 : index
    %c0_9 = arith.constant 0 : index
    %15 = vector.load %arg5[%14, %c0_8, %c0_9] : memref<2x8x128xf32, #tpu.memory_space<vmem>>, vector<1x8x128xf32>
    %16 = vector.shape_cast %15 : vector<1x8x128xf32> to vector<8x128xf32>
    %17 = arith.cmpf olt, %16, %13 : vector<8x128xf32>
    %18 = arith.extui %17 : vector<8x128xi1> to vector<8x128xi32>
    %19 = arith.sitofp %18 : vector<8x128xi32> to vector<8x128xf32>
    %20 = arith.truncf %19 : vector<8x128xf32> to vector<8x128xbf16>
    %cst_10 = arith.constant dense<0.000000e+00> : vector<8x128xf32>
    %21 = tpu.matmul %20, %1, %cst_10 {dimension_numbers = #tpu.dot_dimension_numbers<[1], [1], [0], [0], [0, 0, 1, 0], [], []>} : vector<8x128xbf16>, vector<128x128xbf16>, vector<8x128xf32> -> vector<8x128xf32>
    %22 = vector.broadcast %2 : vector<1x128xf32> to vector<8x128xf32>
    %23 = arith.addf %21, %22 : vector<8x128xf32>
    %24 = arith.negf %23 : vector<8x128xf32>
    %25 = math.exp %24 : vector<8x128xf32>
    %cst_11 = arith.constant 1.000000e+00 : f32
    %26 = vector.broadcast %cst_11 : f32 to vector<8x128xf32>
    %27 = arith.addf %26, %25 : vector<8x128xf32>
    %28 = arith.divf %26, %27 : vector<8x128xf32>
    %29 = arith.index_cast %c0_i32 : i32 to index
    %c0_12 = arith.constant 0 : index
    %c0_13 = arith.constant 0 : index
    %30 = vector.load %arg6[%29, %c0_12, %c0_13] : memref<2x8x128xf32, #tpu.memory_space<vmem>>, vector<1x8x128xf32>
    %31 = vector.shape_cast %30 : vector<1x8x128xf32> to vector<8x128xf32>
    %32 = arith.cmpf olt, %31, %28 : vector<8x128xf32>
    %33 = arith.extui %32 : vector<8x128xi1> to vector<8x128xi32>
    %34 = arith.sitofp %33 : vector<8x128xi32> to vector<8x128xf32>
    %c1_i32 = arith.constant 1 : i32
    %35 = arith.truncf %34 : vector<8x128xf32> to vector<8x128xbf16>
    %cst_14 = arith.constant dense<0.000000e+00> : vector<8x128xf32>
    %36 = tpu.matmul %35, %1, %cst_14 {dimension_numbers = #tpu.dot_dimension_numbers<[1], [0], [0], [1], [0, 0, 1, 1], [], []>} : vector<8x128xbf16>, vector<128x128xbf16>, vector<8x128xf32> -> vector<8x128xf32>
    %37 = vector.broadcast %3 : vector<1x128xf32> to vector<8x128xf32>
    %38 = arith.addf %36, %37 : vector<8x128xf32>
    %39 = arith.negf %38 : vector<8x128xf32>
    %40 = math.exp %39 : vector<8x128xf32>
    %cst_15 = arith.constant 1.000000e+00 : f32
    %41 = vector.broadcast %cst_15 : f32 to vector<8x128xf32>
    %42 = arith.addf %41, %40 : vector<8x128xf32>
    %43 = arith.divf %41, %42 : vector<8x128xf32>
    %44 = arith.index_cast %c1_i32 : i32 to index
    %c0_16 = arith.constant 0 : index
    %c0_17 = arith.constant 0 : index
    %45 = vector.load %arg5[%44, %c0_16, %c0_17] : memref<2x8x128xf32, #tpu.memory_space<vmem>>, vector<1x8x128xf32>
    %46 = vector.shape_cast %45 : vector<1x8x128xf32> to vector<8x128xf32>
    %47 = arith.cmpf olt, %46, %43 : vector<8x128xf32>
    %48 = arith.extui %47 : vector<8x128xi1> to vector<8x128xi32>
    %49 = arith.sitofp %48 : vector<8x128xi32> to vector<8x128xf32>
    %50 = arith.truncf %49 : vector<8x128xf32> to vector<8x128xbf16>
    %cst_18 = arith.constant dense<0.000000e+00> : vector<8x128xf32>
    %51 = tpu.matmul %50, %1, %cst_18 {dimension_numbers = #tpu.dot_dimension_numbers<[1], [1], [0], [0], [0, 0, 1, 0], [], []>} : vector<8x128xbf16>, vector<128x128xbf16>, vector<8x128xf32> -> vector<8x128xf32>
    %52 = vector.broadcast %2 : vector<1x128xf32> to vector<8x128xf32>
    %53 = arith.addf %51, %52 : vector<8x128xf32>
    %54 = arith.negf %53 : vector<8x128xf32>
    %55 = math.exp %54 : vector<8x128xf32>
    %cst_19 = arith.constant 1.000000e+00 : f32
    %56 = vector.broadcast %cst_19 : f32 to vector<8x128xf32>
    %57 = arith.addf %56, %55 : vector<8x128xf32>
    %58 = arith.divf %56, %57 : vector<8x128xf32>
    %59 = arith.index_cast %c1_i32 : i32 to index
    %c0_20 = arith.constant 0 : index
    %c0_21 = arith.constant 0 : index
    %60 = vector.load %arg6[%59, %c0_20, %c0_21] : memref<2x8x128xf32, #tpu.memory_space<vmem>>, vector<1x8x128xf32>
    %61 = vector.shape_cast %60 : vector<1x8x128xf32> to vector<8x128xf32>
    %62 = arith.cmpf olt, %61, %58 : vector<8x128xf32>
    %63 = arith.extui %62 : vector<8x128xi1> to vector<8x128xi32>
    %64 = arith.sitofp %63 : vector<8x128xi32> to vector<8x128xf32>
    %c2_i32 = arith.constant 2 : i32
    %c0_22 = arith.constant 0 : index
    %c0_23 = arith.constant 0 : index
    %65 = vector.load %arg7[%c0_22, %c0_23] : memref<8x128xf32, #tpu.memory_space<vmem>>, vector<8x128xf32>
    tpu.vector_store %arg7[%c0_22, %c0_23], %64 {strides = array<i32>} : memref<8x128xf32, #tpu.memory_space<vmem>>, vector<8x128xf32>,
    return
  }
  func.func @transform_0(%arg0: i32) -> (i32, i32) {
    %c0_i32 = arith.constant 0 : i32
    %c0_i32_0 = arith.constant 0 : i32
    return %arg0, %c0_i32 : i32, i32
  }
  func.func @transform_1(%arg0: i32) -> (i32, i32) {
    %c0_i32 = arith.constant 0 : i32
    %c0_i32_0 = arith.constant 0 : i32
    %c0_i32_1 = arith.constant 0 : i32
    return %c0_i32, %c0_i32_0 : i32, i32
  }
  func.func @transform_2(%arg0: i32) -> (i32, i32) {
    %c0_i32 = arith.constant 0 : i32
    %c0_i32_0 = arith.constant 0 : i32
    %c0_i32_1 = arith.constant 0 : i32
    return %c0_i32, %c0_i32_0 : i32, i32
  }
  func.func @transform_3(%arg0: i32) -> (i32, i32) {
    %c0_i32 = arith.constant 0 : i32
    %c0_i32_0 = arith.constant 0 : i32
    %c0_i32_1 = arith.constant 0 : i32
    return %c0_i32, %c0_i32_0 : i32, i32
  }
  func.func @transform_4(%arg0: i32) -> (i32, i32, i32) {
    %c0_i32 = arith.constant 0 : i32
    %c0_i32_0 = arith.constant 0 : i32
    %c0_i32_1 = arith.constant 0 : i32
    return %c0_i32, %arg0, %c0_i32_0 : i32, i32, i32
  }
  func.func @transform_5(%arg0: i32) -> (i32, i32, i32) {
    %c0_i32 = arith.constant 0 : i32
    %c0_i32_0 = arith.constant 0 : i32
    %c0_i32_1 = arith.constant 0 : i32
    return %c0_i32, %arg0, %c0_i32_0 : i32, i32, i32
  }
  func.func @transform_6(%arg0: i32) -> (i32, i32) {
    %c0_i32 = arith.constant 0 : i32
    %c0_i32_0 = arith.constant 0 : i32
    return %arg0, %c0_i32 : i32, i32
  }
}

</mosaic_0001>

<llo_original>
// kernel: tpu_custom_call.1
$region0: #{tpu_custom_call.1}
  #allocation0 [shape = 'u32[]', space=smem, size = 0x4, offset = 0x4, fixed_abs, tag = 'smem constant byte address 0x4 - core index']
  #allocation1 [shape = 'u32[72,128]{1,0:T(1,128)}', space=vmem, size = 0x9000, scoped, tag = 'internal scratch']
  %s0 = inlined_call_operand.hbm [shape: f32[8,128], index: 0, kind: input, shape index: {}]
  %s1 = inlined_call_operand.hbm [shape: f32[128,128], index: 1, kind: input, shape index: {}]
  %s2 = inlined_call_operand.vmem [shape: f32[1,128], index: 2, kind: input, shape index: {}]
  %s3 = inlined_call_operand.vmem [shape: f32[1,128], index: 3, kind: input, shape index: {}]
  %s4 = inlined_call_operand.hbm [shape: f32[2,8,128], index: 4, kind: input, shape index: {}]
  %s5 = inlined_call_operand.hbm [shape: f32[2,8,128], index: 5, kind: input, shape index: {}]
  %s6 = inlined_call_operand.hbm [shape: f32[8,128], index: 6, kind: output, shape index: {}]
  %s7 = sld [smem:[#allocation0]]
  $region50: #{tpu_custom_call.1} parent=0
    _
  %s9 = ssub.s32 1, %s7
  %s10 = scalar_select 0, %s9, %s7
  $region1: #{tpu_custom_call.1} parent=0
    #allocation2 [shape = 'u8[4096]{0}', space=vmem, size = 0x1000, scoped, tag = 'input window, operand 0, single buffered']
    #allocation3 [shape = 's32[1]{0}', space=sflag, size = 0x4, scoped, tag = 'scoped memory for tpu_custom_call.1']
    #allocation4 [shape = 's32[1]{0}', space=sflag, size = 0x4, scoped, tag = 'scoped memory for tpu_custom_call.1']
    #allocation5 [shape = 'u8[65536]{0}', space=vmem, size = 0x10000, scoped, tag = 'input window, operand 1, single buffered']
    #allocation6 [shape = 's32[1]{0}', space=sflag, size = 0x4, scoped, tag = 'scoped memory for tpu_custom_call.1']
    #allocation7 [shape = 'u8[8192]{0}', space=vmem, size = 0x2000, scoped, tag = 'input window, operand 4, single buffered']
    #allocation8 [shape = 'u8[8192]{0}', space=vmem, size = 0x2000, scoped, tag = 'input window, operand 5, single buffered']
    #allocation9 [shape = 's32[1]{0}', space=sflag, size = 0x4, scoped, tag = 'scoped memory for tpu_custom_call.1']
    #allocation10 [shape = 'u8[4096]{0}', space=vmem, size = 0x1000, scoped, tag = 'output window, operand 0, single buffered']
    %11 = vsyncpa [#allocation3], 0
    %12 = vsyncpa [#allocation6], 0
    %13 = vsyncpa [#allocation9], 0
    %14 = vsyncpa [#allocation4], 0
    // Predicated region
    $region2: #{tpu_custom_call.1} parent=1 // pred_check
      _
    $region3: #{tpu_custom_call.1} parent=1 // pred_check_branch
      %16 = sbr.rel (0) target = $region5
    $region4: #{tpu_custom_call.1} parent=1 // pred_region
      %18 = vsyncadd [#allocation3], 0
      %s20 = sshll.u32 %s0, 4
      %s21 = int_to_ptr.hbm [resolvable:$true] %s20
      %s22 = sshll.u32 [#allocation2], 4
      %s23 = int_to_ptr.vmem [resolvable:$true] %s22
      %25 = dma.hbm_to_vmem [thread:$0]  %s21, 128, %s23, [#allocation3]
    $region5: #{tpu_custom_call.1} parent=1 // pred_fallthru
      _
    // Predicated region
    $region6: #{tpu_custom_call.1} parent=1 // pred_check
      _
    $region7: #{tpu_custom_call.1} parent=1 // pred_check_branch
      %27 = sbr.rel (0) target = $region9
    $region8: #{tpu_custom_call.1} parent=1 // pred_region
      %29 = vsyncadd [#allocation6], 0
      %s30 = sshll.u32 %s1, 4
      %s31 = int_to_ptr.hbm [resolvable:$true] %s30
      %s32 = sshll.u32 [#allocation5], 4
      %s33 = int_to_ptr.vmem [resolvable:$true] %s32
      %38 = dma.hbm_to_vmem [thread:$0]  %s31, 2048, %s33, [#allocation6], 128, 128, 8
    $region9: #{tpu_custom_call.1} parent=1 // pred_fallthru
      _
    // Predicated region
    $region10: #{tpu_custom_call.1} parent=1 // pred_check
      _
    $region11: #{tpu_custom_call.1} parent=1 // pred_check_branch
      %40 = sbr.rel (0) target = $region13
    $region12: #{tpu_custom_call.1} parent=1 // pred_region
      _
    $region13: #{tpu_custom_call.1} parent=1 // pred_fallthru
      _
    // Predicated region
    $region14: #{tpu_custom_call.1} parent=1 // pred_check
      _
    $region15: #{tpu_custom_call.1} parent=1 // pred_check_branch
      %42 = sbr.rel (0) target = $region17
    $region16: #{tpu_custom_call.1} parent=1 // pred_region
      _
    $region17: #{tpu_custom_call.1} parent=1 // pred_fallthru
      _
    // Predicated region
    $region18: #{tpu_custom_call.1} parent=1 // pred_check
      _
    $region19: #{tpu_custom_call.1} parent=1 // pred_check_branch
      %44 = sbr.rel (0) target = $region21
    $region20: #{tpu_custom_call.1} parent=1 // pred_region
      %46 = vsyncadd [#allocation6], 0
      %s47 = sshll.u32 %s4, 4
      %s48 = int_to_ptr.hbm [resolvable:$true] %s47
      %s49 = sshll.u32 [#allocation7], 4
      %s50 = int_to_ptr.vmem [resolvable:$true] %s49
      %55 = dma.hbm_to_vmem [thread:$0]  %s48, 256, %s50, [#allocation6], 128, 128, 8
    $region21: #{tpu_custom_call.1} parent=1 // pred_fallthru
      _
    // Predicated region
    $region22: #{tpu_custom_call.1} parent=1 // pred_check
      _
    $region23: #{tpu_custom_call.1} parent=1 // pred_check_branch
      %57 = sbr.rel (0) target = $region25
    $region24: #{tpu_custom_call.1} parent=1 // pred_region
      %59 = vsyncadd [#allocation9], 0
      %s60 = sshll.u32 %s5, 4
      %s61 = int_to_ptr.hbm [resolvable:$true] %s60
      %s62 = sshll.u32 [#allocation8], 4
      %s63 = int_to_ptr.vmem [resolvable:$true] %s62
      %68 = dma.hbm_to_vmem [thread:$0]  %s61, 256, %s63, [#allocation9], 128, 128, 8
    $region25: #{tpu_custom_call.1} parent=1 // pred_fallthru
      _
    // Predicated region
    $region26: #{tpu_custom_call.1} parent=1 // pred_check
      _
    $region27: #{tpu_custom_call.1} parent=1 // pred_check_branch
      %70 = sbr.rel (0) target = $region29
    $region28: #{tpu_custom_call.1} parent=1 // pred_region
      %72 = dma.done [#allocation3], 128
    $region29: #{tpu_custom_call.1} parent=1 // pred_fallthru
      _
    // Predicated region
    $region30: #{tpu_custom_call.1} parent=1 // pred_check
      _
    $region31: #{tpu_custom_call.1} parent=1 // pred_check_branch
      %74 = sbr.rel (0) target = $region33
    $region32: #{tpu_custom_call.1} parent=1 // pred_region
      %76 = dma.done [#allocation6], 2048
    $region33: #{tpu_custom_call.1} parent=1 // pred_fallthru
      _
    // Predicated region
    $region34: #{tpu_custom_call.1} parent=1 // pred_check
      _
    $region35: #{tpu_custom_call.1} parent=1 // pred_check_branch
      %78 = sbr.rel (0) target = $region37
    $region36: #{tpu_custom_call.1} parent=1 // pred_region
      %80 = dma.done [#allocation6], 256
    $region37: #{tpu_custom_call.1} parent=1 // pred_fallthru
      _
    // Predicated region
    $region38: #{tpu_custom_call.1} parent=1 // pred_check
      _
    $region39: #{tpu_custom_call.1} parent=1 // pred_check_branch
      %82 = sbr.rel (0) target = $region41
    $region40: #{tpu_custom_call.1} parent=1 // pred_region
      %84 = dma.done [#allocation9], 256
    $region41: #{tpu_custom_call.1} parent=1 // pred_fallthru
      _
    %v85 = vld [vmem:[#allocation5] sm:$0xff]
    %v86 = vld [vmem:[#allocation5 + $0x8] sm:$0xff]
    %v87 = vld [vmem:[#allocation5 + $0x10] sm:$0xff]
    %v88 = vld [vmem:[#allocation5 + $0x18] sm:$0xff]
    %v89 = vld [vmem:[#allocation5 + $0x20] sm:$0xff]
    %v90 = vld [vmem:[#allocation5 + $0x28] sm:$0xff]
    %v91 = vld [vmem:[#allocation5 + $0x30] sm:$0xff]
    %v92 = vld [vmem:[#allocation5 + $0x38] sm:$0xff]
    %v93 = vld [vmem:[#allocation5 + $0x40] sm:$0xff]
    %v94 = vld [vmem:[#allocation5 + $0x48] sm:$0xff]
    %v95 = vld [vmem:[#allocation5 + $0x50] sm:$0xff]
    %v96 = vld [vmem:[#allocation5 + $0x58] sm:$0xff]
    %v97 = vld [vmem:[#allocation5 + $0x60] sm:$0xff]
    %v98 = vld [vmem:[#allocation5 + $0x68] sm:$0xff]
    %v99 = vld [vmem:[#allocation5 + $0x70] sm:$0xff]
    %v100 = vld [vmem:[#allocation5 + $0x78] sm:$0xff]
    %v101 = vpack.c.bf16 %v86, %v85
    %v102 = vpack.c.bf16 %v88, %v87
    %v103 = vpack.c.bf16 %v90, %v89
    %v104 = vpack.c.bf16 %v92, %v91
    %v105 = vpack.c.bf16 %v94, %v93
    %v106 = vpack.c.bf16 %v96, %v95
    %v107 = vpack.c.bf16 %v98, %v97
    %v108 = vpack.c.bf16 %v100, %v99
    %v109 = vld [vmem:[%s2] sm:$0x1]
    %v110 = vld [vmem:[%s3] sm:$0x1]
    %v111 = vld [vmem:[#allocation2] sm:$0xff]
    %v112 = vpack.c.bf16 %v111, %v111
    %v114 = vperm.slane %v110, 0
    %116 = vmatpush.bf16.msra.mxu0 %v108
    %117 = vmatpush.bf16.msra.mxu0 %v107
    %118 = vmatpush.bf16.msra.mxu0 %v106
    %119 = vmatpush.bf16.msra.mxu0 %v105
    %120 = vmatpush.bf16.msra.mxu0 %v104
    %121 = vmatpush.bf16.msra.mxu0 %v103
    %122 = vmatpush.bf16.msra.mxu0 %v102
    %123 = vmatpush.bf16.msra.mxu0 %v101
    %124 = vmatmul.bf16.gmra.mxu0 %v112
    %v125 = vpop.f32.mrf.mxu0
    %v126 = vadd.f32 %v114, %v125
    %v127 = vpop.f32.mrf.mxu0
    %128 = vdwg.mxu0
    %v129 = vxor.u32 %v126, 2147483648
    %v130 = vmul.f32 %v129, 1.442695
    %v131 = vpow.pop %v130
    %v132 = vadd.f32 %v131, 1.0
    %v133 = vrcp.pop %v132
    %v134 = vmul.f32 %v132, %v133
    %v135 = vsub.f32 1.0, %v134
    %v136 = vmul.f32 %v133, %v135
    %v137 = vadd.f32 %v133, %v136
    %vm138 = vweird.f32 %v132
    %vm139 = vweird.f32 %v133
    %vm140 = vmor %vm138, %vm139
    %v141 = vsel %vm140, %v133, %v137
    %v142 = vand.u32 2147483647, %v132
    %vm143 = vcmp.eq.f32.partialorder %v142, 8.507059e+37
    %v144 = vand.u32 %v132, 2147483648
    %v145 = vor.u32 1.1754944e-38, %v144
    %v146 = vsel %vm143, %v145, %v141
    %v147 = vmul.f32 1.0, %v146
    %v148 = vld [vmem:[#allocation7] sm:$0xff]
    %vm149 = vcmp.lt.f32.partialorder %v148, %v147
    %v150 = vsel %vm149, 1, 0
    %v151 = vcvt.s32.f32 %v150
    %v152 = vpack.c.bf16 %v151, %v151
    %v154 = vperm.slane %v109, 0
    %156 = vmatpush.bf16.xpose.msra.mxu0 %v108
    %157 = vmatpush.bf16.xpose.msra.mxu0 %v107
    %158 = vmatpush.bf16.xpose.msra.mxu0 %v106
    %159 = vmatpush.bf16.xpose.msra.mxu0 %v105
    %160 = vmatpush.bf16.xpose.msra.mxu0 %v104
    %161 = vmatpush.bf16.xpose.msra.mxu0 %v103
    %162 = vmatpush.bf16.xpose.msra.mxu0 %v102
    %163 = vmatpush.bf16.xpose.msra.mxu0 %v101
    %164 = vmatmul.bf16.gmra.mxu0 %v152
    %v165 = vpop.f32.mrf.mxu0
    %v166 = vadd.f32 %v154, %v165
    %v167 = vpop.f32.mrf.mxu0
    %168 = vdwg.mxu0
    %v169 = vxor.u32 %v166, 2147483648
    %v170 = vmul.f32 %v169, 1.442695
    %v171 = vpow.pop %v170
    %v172 = vadd.f32 %v171, 1.0
    %v173 = vrcp.pop %v172
    %v174 = vmul.f32 %v172, %v173
    %v175 = vsub.f32 1.0, %v174
    %v176 = vmul.f32 %v173, %v175
    %v177 = vadd.f32 %v173, %v176
    %vm178 = vweird.f32 %v172
    %vm179 = vweird.f32 %v173
    %vm180 = vmor %vm178, %vm179
    %v181 = vsel %vm180, %v173, %v177
    %v182 = vand.u32 2147483647, %v172
    %vm183 = vcmp.eq.f32.partialorder %v182, 8.507059e+37
    %v184 = vand.u32 %v172, 2147483648
    %v185 = vor.u32 1.1754944e-38, %v184
    %v186 = vsel %vm183, %v185, %v181
    %v187 = vmul.f32 1.0, %v186
    %v188 = vld [vmem:[#allocation8] sm:$0xff]
    %vm189 = vcmp.lt.f32.partialorder %v188, %v187
    %v190 = vsel %vm189, 1, 0
    %v191 = vcvt.s32.f32 %v190
    %v192 = vpack.c.bf16 %v191, %v191
    %193 = vmatpush.bf16.msra.mxu0 %v108
    %194 = vmatpush.bf16.msra.mxu0 %v107
    %195 = vmatpush.bf16.msra.mxu0 %v106
    %196 = vmatpush.bf16.msra.mxu0 %v105
    %197 = vmatpush.bf16.msra.mxu0 %v104
    %198 = vmatpush.bf16.msra.mxu0 %v103
    %199 = vmatpush.bf16.msra.mxu0 %v102
    %200 = vmatpush.bf16.msra.mxu0 %v101
    %201 = vmatmul.bf16.gmra.mxu0 %v192
    %v202 = vpop.f32.mrf.mxu0
    %v203 = vadd.f32 %v114, %v202
    %v204 = vpop.f32.mrf.mxu0
    %205 = vdwg.mxu0
    %v206 = vxor.u32 %v203, 2147483648
    %v207 = vmul.f32 %v206, 1.442695
    %v208 = vpow.pop %v207
    %v209 = vadd.f32 %v208, 1.0
    %v210 = vrcp.pop %v209
    %v211 = vmul.f32 %v209, %v210
    %v212 = vsub.f32 1.0, %v211
    %v213 = vmul.f32 %v210, %v212
    %v214 = vadd.f32 %v210, %v213
    %vm215 = vweird.f32 %v209
    %vm216 = vweird.f32 %v210
    %vm217 = vmor %vm215, %vm216
    %v218 = vsel %vm217, %v210, %v214
    %v219 = vand.u32 2147483647, %v209
    %vm220 = vcmp.eq.f32.partialorder %v219, 8.507059e+37
    %v221 = vand.u32 %v209, 2147483648
    %v222 = vor.u32 1.1754944e-38, %v221
    %v223 = vsel %vm220, %v222, %v218
    %v224 = vmul.f32 1.0, %v223
    %s225 = scalar_lea.vmem [#allocation7], 8
    %v226 = vld [vmem:[%s225] sm:$0xff]
    %vm227 = vcmp.lt.f32.partialorder %v226, %v224
    %v228 = vsel %vm227, 1, 0
    %v229 = vcvt.s32.f32 %v228
    %v230 = vpack.c.bf16 %v229, %v229
    %231 = vmatpush.bf16.xpose.msra.mxu0 %v108
    %232 = vmatpush.bf16.xpose.msra.mxu0 %v107
    %233 = vmatpush.bf16.xpose.msra.mxu0 %v106
    %234 = vmatpush.bf16.xpose.msra.mxu0 %v105
    %235 = vmatpush.bf16.xpose.msra.mxu0 %v104
    %236 = vmatpush.bf16.xpose.msra.mxu0 %v103
    %237 = vmatpush.bf16.xpose.msra.mxu0 %v102
    %238 = vmatpush.bf16.xpose.msra.mxu0 %v101
    %239 = vmatmul.bf16.gmra.mxu0 %v230
    %v240 = vpop.f32.mrf.mxu0
    %v241 = vadd.f32 %v154, %v240
    %v242 = vpop.f32.mrf.mxu0
    %243 = vdwg.mxu0
    %v244 = vxor.u32 %v241, 2147483648
    %v245 = vmul.f32 %v244, 1.442695
    %v246 = vpow.pop %v245
    %v247 = vadd.f32 %v246, 1.0
    %v248 = vrcp.pop %v247
    %v249 = vmul.f32 %v247, %v248
    %v250 = vsub.f32 1.0, %v249
    %v251 = vmul.f32 %v248, %v250
    %v252 = vadd.f32 %v248, %v251
    %vm253 = vweird.f32 %v247
    %vm254 = vweird.f32 %v248
    %vm255 = vmor %vm253, %vm254
    %v256 = vsel %vm255, %v248, %v252
    %v257 = vand.u32 2147483647, %v247
    %vm258 = vcmp.eq.f32.partialorder %v257, 8.507059e+37
    %v259 = vand.u32 %v247, 2147483648
    %v260 = vor.u32 1.1754944e-38, %v259
    %v261 = vsel %vm258, %v260, %v256
    %v262 = vmul.f32 1.0, %v261
    %s263 = scalar_lea.vmem [#allocation8], 8
    %v264 = vld [vmem:[%s263] sm:$0xff]
    %vm265 = vcmp.lt.f32.partialorder %v264, %v262
    %v266 = vsel %vm265, 1, 0
    %v267 = vcvt.s32.f32 %v266
    %268 = vst [vmem:[#allocation10] sm:$0xff] %v267
    // Predicated region
    $region42: #{tpu_custom_call.1} parent=1 // pred_check
      _
    $region43: #{tpu_custom_call.1} parent=1 // pred_check_branch
      %270 = sbr.rel (0) target = $region45
    $region44: #{tpu_custom_call.1} parent=1 // pred_region
      %272 = vsyncadd [#allocation4], 0
      %s274 = sshll.u32 [#allocation10], 4
      %s275 = int_to_ptr.vmem [resolvable:$true] %s274
      %s276 = sshll.u32 %s6, 4
      %s277 = int_to_ptr.hbm [resolvable:$true] %s276
      %279 = dma.vmem_to_hbm [thread:$0]  %s275, 128, %s277, [#allocation4]
    $region45: #{tpu_custom_call.1} parent=1 // pred_fallthru
      _
    // Predicated region
    $region46: #{tpu_custom_call.1} parent=1 // pred_check
      _
    $region47: #{tpu_custom_call.1} parent=1 // pred_check_branch
      %281 = sbr.rel (0) target = $region49
    $region48: #{tpu_custom_call.1} parent=1 // pred_region
      %283 = dma.done [#allocation4], 128
    $region49: #{tpu_custom_call.1} parent=1 // pred_fallthru
      _
    %284 = vsyncpa [#allocation3], 1
    %285 = vsyncpa [#allocation6], 1
    %286 = vsyncpa [#allocation9], 1
    %287 = vsyncpa [#allocation4], 1

</llo_original>
